<compile_context>
chip_gen: v7x
topology: tpu7x:2x2x1
jax: 0.10.0
libtpu: 0.0.40
codegen_flags: <defaults>
</compile_context>

<pallas_src>
import math
from functools import partial

import numpy as np
import jax
import jax.numpy as jnp
from jax.experimental import pallas as pl
from jax.experimental.pallas import tpu as pltpu


def _round_up(x, m):
    return (x + m - 1) // m * m


def _vmem_capacity_bytes():
    try:
        return int(pltpu.get_tpu_info().vmem_capacity_bytes)
    except Exception:
        return 64 * 1024 * 1024  # conservative default (v7x per-TensorCore VMEM)


def _vmem_limit(est_bytes, cap):
    lo = 32 * 1024 * 1024
    hi = max(lo, cap - 4 * 1024 * 1024)
    return int(min(max(est_bytes * 3 // 2, lo), hi))


# ----------------------------------------------------------------------------
# Pallas kernels
# ----------------------------------------------------------------------------
def _coarse_level_kernel(x_ref, mw_ref, wc_ref, y_ref):
    """Stage 1, per coarse level (c2/c3/c4), per (batch, row-tile) grid step.

    Projection FIRST (C -> E_pad, with Linear + fuse-conv chunk + BN scale folded
    offline into wc), then width-direction bilinear upsample (w -> W1) as one small
    matmul per native row, written directly as (W1, E_pad) rows (no transposes).
    """
    th, w, C = x_ref.shape
    E = wc_ref.shape[1]
    x2d = x_ref[...].reshape(th * w, C)                                   # bf16 tokens
    proj = jnp.dot(x2d, wc_ref[...], preferred_element_type=jnp.float32)  # (th*w, E_pad)
    proj = proj.astype(jnp.bfloat16).reshape(th, w, E)
    for t in range(th):  # short static loop; each iter is a clean (W1, w) @ (w, E) matmul
        y_ref[t] = jnp.dot(mw_ref[...], proj[t],
                           preferred_element_type=jnp.float32).astype(jnp.bfloat16)


def _height_lerp_band(y_ref, t, TH, H1):
    """2-tap VPU bilinear height interpolation of one TH-row output band.

    y_ref: (h, W1, E_pad) bf16 width-upsampled level.  Requires H1 % h == 0 and
    TH % (H1 // h) == 0, so the tap pattern repeats identically for every band
    (only the base source row shifts) and all lerp weights are compile-time
    constants.  Each needed source row is loaded exactly once per band; the
    top/bottom clamping of F.interpolate(align_corners=False) is reproduced with
    clipped row indices and a zeroed top-edge weight.
    """
    h, _, _ = y_ref.shape
    s = H1 // h               # integer upsample factor
    step = TH // s            # source rows advanced per output band
    base = t * step
    src_rows = {}
    for k in range(-1, step + 1):
        idx = jnp.clip(base + k, 0, h - 1)
        src_rows[k] = y_ref[pl.ds(idx, 1)].astype(jnp.float32)            # (1, W1, E)
    rows = []
    for j in range(TH):
        src = (j + 0.5) / s - 0.5
        f = math.floor(src)
        lam = src - f
        if f >= 0:
            lam_eff = lam
        else:
            # only the very first band can hit the clamped top edge (src < 0 -> lam = 0)
            lam_eff = jnp.where(base + f < 0, 0.0, lam)
        r0, r1 = src_rows[f], src_rows[f + 1]
        rows.append(r0 + lam_eff * (r1 - r0))
    return jnp.concatenate(rows, axis=0)                                  # (TH, W1, E) f32


def _fuse_pred_kernel(x1_ref, y2_ref, y3_ref, y4_ref,
                      wc1_ref, shift_ref, wp_ref, bp_ref, o_ref, *, H1):
    """Stage 2, fused + token-tiled: one (batch, row-band) output tile per grid step.

    c1 token projection (no interpolation needed), 2-tap height lerp of the three
    width-upsampled coarse levels, folded bias/BN shift + ReLU, 1x1 pred conv.  The
    (P, E_pad) accumulator never leaves VMEM; nothing full-resolution round-trips
    through HBM between the fuse and pred stages.
    """
    TH, W1, C1 = x1_ref.shape
    E = wc1_ref.shape[1]
    P = TH * W1
    t = pl.program_id(1)
    # c1 is already at output resolution -> direct token projection on the MXU.
    x1 = x1_ref[...].reshape(P, C1)
    acc = jnp.dot(x1, wc1_ref[...], preferred_element_type=jnp.float32)   # (P, E_pad)
    # coarse levels: height interpolation on the VPU (MXU stays free for the matmuls).
    for y_ref in (y2_ref, y3_ref, y4_ref):
        acc = acc + _height_lerp_band(y_ref, t, TH, H1).reshape(P, E)
    # BN scale is folded into the projection weights offline; only shift + ReLU remain.
    z = jnp.maximum(acc + shift_ref[...], 0.0)
    # TODO(synk): Dropout2d is identity in eval mode; training-mode channel dropout and
    # BatchNorm batch statistics are not implemented here.
    logits = jnp.dot(z.astype(jnp.bfloat16), wp_ref[...],
                     preferred_element_type=jnp.float32) + bp_ref[...]
    o_ref[...] = logits.astype(o_ref.dtype)


# ----------------------------------------------------------------------------
# Wrappers around pallas_call
# ----------------------------------------------------------------------------
def _pick_stage1_rows(h, W1):
    limit = max(1, 2048 // max(W1, 1))
    cands = [t for t in range(1, h + 1) if h % t == 0 and t <= limit]
    return max(cands) if cands else 1


def coarse_level_project_upsample(x_tok, wc, mw):
    """x_tok: (N, h, w, C) NHWC bf16 -> (N, h, W1, E_pad) bf16 (projected + width-upsampled)."""
    N, h, w, C = x_tok.shape
    E_pad = wc.shape[1]
    W1 = mw.shape[0]
    th = _pick_stage1_rows(h, W1)
    cap = _vmem_capacity_bytes()
    est = (th * w * C * 2 * 2                  # input block, double-buffered
           + th * W1 * E_pad * 2 * 2           # output block, double-buffered
           + (C * E_pad + W1 * w) * 2          # weights
           + th * w * E_pad * 6                # f32 + bf16 projection intermediate
           + W1 * E_pad * 4)                   # per-row interp result
    return pl.pallas_call(
        _coarse_level_kernel,
        out_shape=jax.ShapeDtypeStruct((N, h, W1, E_pad), jnp.bfloat16),
        grid=(N, h // th),
        in_specs=[
            pl.BlockSpec((None, th, w, C), lambda n, r: (n, r, 0, 0)),
            pl.BlockSpec((W1, w), lambda n, r: (0, 0)),
            pl.BlockSpec((C, E_pad), lambda n, r: (0, 0)),
        ],
        out_specs=pl.BlockSpec((None, th, W1, E_pad), lambda n, r: (n, r, 0, 0)),
        compiler_params=pltpu.CompilerParams(
            dimension_semantics=("parallel", "parallel"),
            vmem_limit_bytes=_vmem_limit(est, cap)),
    )(x_tok, mw, wc)


def _stage2_vmem_bytes(TH, W1, E_pad, C1, CLS_pad, coarse_hs, out_bytes, y_buffers):
    P = TH * W1
    y_res = sum(h * W1 * E_pad * 2 for h in coarse_hs) * y_buffers
    c1_blk = TH * W1 * C1 * 2 * 2
    out_blk = P * CLS_pad * out_bytes * 2
    weights = (C1 * E_pad * 2 + E_pad * CLS_pad * 2 + E_pad * 4 + CLS_pad * 4) * y_buffers
    inter = P * E_pad * (4 + 4 + 2) + 6 * W1 * E_pad * 4
    return y_res + c1_blk + out_blk + weights + inter


def _validate_row_tile(H1, W1, TH, coarse_hs):
    if H1 % TH:
        raise ValueError(f"row_tile {TH} must divide H1={H1}")
    if TH != H1 and (TH * W1) % 8:
        raise ValueError(f"row_tile*W1 must be a multiple of 8 (got {TH}*{W1})")
    for h in coarse_hs:
        if H1 % h:
            raise ValueError(f"coarse height {h} must divide H1={H1}")
        if TH % (H1 // h):
            raise ValueError(f"row_tile {TH} must be a multiple of upsample factor {H1 // h}")


def _pick_row_tile(H1, W1, coarse_hs, vmem_cap):
    lcm = 1
    for h in coarse_hs:
        if H1 % h:
            raise ValueError(f"coarse height {h} must divide H1={H1}")
        s = H1 // h
        lcm = lcm * s // math.gcd(lcm, s)
    # generation-aware token budget: smaller tiles on small-VMEM parts (v7x).
    target_tokens = 2048 if vmem_cap >= 96 * 1024 * 1024 else 1024
    cands = [t for t in range(lcm, H1 + 1, lcm)
             if H1 % t == 0 and (t == H1 or (t * W1) % 8 == 0)]
    if not cands:
        raise ValueError(f"no legal row tile for H1={H1}, coarse heights {coarse_hs}")
    fitting = [t for t in cands if t * W1 <= target_tokens]
    return max(fitting) if fitting else min(cands)


def fuse_pred(c1_tok, y2, y3, y4, kp, row_tile, out_dtype=jnp.float32):
    """c1 tokens + 3 width-upsampled levels -> (N, H1*W1, CLS_pad) logits (class-padded)."""
    N, H1, W1, C1 = c1_tok.shape
    E_pad = kp["wc_c1"].shape[1]
    CLS_pad = kp["w_pred"].shape[1]
    TH = row_tile
    P = TH * W1
    coarse_hs = (y2.shape[1], y3.shape[1], y4.shape[1])
    _validate_row_tile(H1, W1, TH, coarse_hs)
    out_bytes = 2 if out_dtype == jnp.bfloat16 else 4
    cap = _vmem_capacity_bytes()
    est_double = _stage2_vmem_bytes(TH, W1, E_pad, C1, CLS_pad, coarse_hs, out_bytes, 2)
    # v7x (64 MiB VMEM): single-buffer the grid-invariant y levels / weights so their
    # resident footprint halves; v5e/v6e (128 MiB): keep double buffering so the next
    # batch element's y DMA overlaps the last row tiles of the current one.
    want_single = est_double > 0.7 * cap

    def _call(single_buffer):
        est = _stage2_vmem_bytes(TH, W1, E_pad, C1, CLS_pad, coarse_hs, out_bytes,
                                 1 if single_buffer else 2)

        def inv_spec(shape, index_map):
            if single_buffer:
                return pl.BlockSpec(shape, index_map, pipeline_mode=pl.Buffered(1))
            return pl.BlockSpec(shape, index_map)

        in_specs = [
            pl.BlockSpec((None, TH, W1, C1), lambda n, t: (n, t, 0, 0)),
            # width-upsampled coarse levels: constant block index per batch element, so
            # the DMA is issued once per n and skipped for the remaining row tiles.
            inv_spec((None, coarse_hs[0], W1, E_pad), lambda n, t: (n, 0, 0, 0)),
            inv_spec((None, coarse_hs[1], W1, E_pad), lambda n, t: (n, 0, 0, 0)),
            inv_spec((None, coarse_hs[2], W1, E_pad), lambda n, t: (n, 0, 0, 0)),
            inv_spec((C1, E_pad), lambda n, t: (0, 0)),
            inv_spec((1, E_pad), lambda n, t: (0, 0)),
            inv_spec((E_pad, CLS_pad), lambda n, t: (0, 0)),
            inv_spec((1, CLS_pad), lambda n, t: (0, 0)),
        ]
        return pl.pallas_call(
            partial(_fuse_pred_kernel, H1=H1),
            out_shape=jax.ShapeDtypeStruct((N, H1 * W1, CLS_pad), out_dtype),
            grid=(N, H1 // TH),
            in_specs=in_specs,
            # n stays the slowest grid axis so the per-n y-level DMA-skip reuse survives
            # the megacore split.
            out_specs=pl.BlockSpec((None, P, CLS_pad), lambda n, t: (n, t, 0)),
            compiler_params=pltpu.CompilerParams(
                dimension_semantics=("parallel", "parallel"),
                vmem_limit_bytes=_vmem_limit(est, cap)),
        )(c1_tok, y2, y3, y4, kp["wc_c1"], kp["bn_shift"], kp["w_pred"], kp["b_pred"])

    if not want_single:
        return _call(False)
    try:
        return _call(True)
    except Exception:
        # pl.Buffered(1) unavailable on this jax version -> default double-buffered
        # pipeline (identical results, only a larger VMEM footprint).
        return _call(False)


# ----------------------------------------------------------------------------
# Glue: interpolation matrices, parameters, full forward, reference
# ----------------------------------------------------------------------------
def _interp_matrix_1d(out_size, in_size):
    """1-D bilinear interpolation matrix matching F.interpolate(align_corners=False)."""
    if out_size == in_size:
        return np.eye(out_size, dtype=np.float32)
    scale = in_size / out_size
    dst = np.arange(out_size, dtype=np.float64)
    src = np.maximum(scale * (dst + 0.5) - 0.5, 0.0)
    i0 = np.clip(np.floor(src).astype(np.int64), 0, in_size - 1)
    i1 = np.where(i0 < in_size - 1, i0 + 1, i0)
    lam = src - i0
    M = np.zeros((out_size, in_size), dtype=np.float64)
    rows = np.arange(out_size)
    np.add.at(M, (rows, i0), 1.0 - lam)
    np.add.at(M, (rows, i1), lam)
    return M.astype(np.float32)


def _to_tokens(x_nchw):
    n, c, h, w = x_nchw.shape
    return jnp.transpose(x_nchw, (0, 2, 3, 1)).reshape(n, h * w, c)


def init_params(key, in_chs, embed_dim, num_classes, sizes):
    """Deterministic synthetic 'PyTorch-like' parameters (shapes match DecoderHead)."""
    H1, W1 = sizes[0]
    names = ("c1", "c2", "c3", "c4")
    keys = iter(jax.random.split(key, 32))
    p = {}
    for name, ci, (h, w) in zip(names, in_chs, sizes):
        p[f"w_{name}"] = 0.02 * jax.random.normal(next(keys), (ci, embed_dim), jnp.float32)
        p[f"b_{name}"] = 0.02 * jax.random.normal(next(keys), (1, embed_dim), jnp.float32)
        # dense kron interpolation matrix kept ONLY for the plain-JAX reference.
        M = np.kron(_interp_matrix_1d(H1, h), _interp_matrix_1d(W1, w))
        p[f"M_{name}"] = jnp.asarray(M)
        p[f"wf_{name}"] = 0.02 * jax.random.normal(next(keys), (embed_dim, embed_dim), jnp.float32)
    p["b_fuse"] = 0.02 * jax.random.normal(next(keys), (1, embed_dim), jnp.float32)
    p["bn_gamma"] = 1.0 + 0.1 * jax.random.normal(next(keys), (1, embed_dim), jnp.float32)
    p["bn_beta"] = 0.1 * jax.random.normal(next(keys), (1, embed_dim), jnp.float32)
    p["bn_mean"] = 0.1 * jax.random.normal(next(keys), (1, embed_dim), jnp.float32)
    p["bn_var"] = jax.random.uniform(next(keys), (1, embed_dim), jnp.float32, 0.5, 1.5)
    p["w_pred"] = 0.02 * jax.random.normal(next(keys), (embed_dim, num_classes), jnp.float32)
    p["b_pred"] = 0.02 * jax.random.normal(next(keys), (1, num_classes), jnp.float32)
    return p


def prepare_kernel_params(p, in_chs, embed_dim, num_classes, sizes):
    """Offline folds (in f32): per-level Linear into its fuse-conv chunk, BN scale into
    the folded weights, biases + BN into a single shift, 1-D width interp matrices,
    lane padding, bf16 casts of the MXU operands."""
    H1, W1 = sizes[0]
    E_pad = _round_up(embed_dim, 128)      # no-op at real embed_dim=768
    CLS_pad = _round_up(num_classes, 128)  # lane-dense output stores; sliced outside
    names = ("c1", "c2", "c3", "c4")
    kp = {"num_classes": num_classes}
    inv = p["bn_gamma"][0] * jax.lax.rsqrt(p["bn_var"][0] + 1e-5)          # (E,)
    b_total = p["b_fuse"][0]
    for name, ci, (h, w) in zip(names, in_chs, sizes):
        # per-channel BN scale commutes with spatial interpolation -> fold into weights.
        w_comb = (p[f"w_{name}"] @ p[f"wf_{name}"]) * inv[None, :]         # (Ci, E)
        b_total = b_total + (p[f"b_{name}"] @ p[f"wf_{name}"])[0]
        wc = jnp.zeros((ci, E_pad), jnp.float32).at[:, :embed_dim].set(w_comb)
        kp[f"wc_{name}"] = wc.astype(jnp.bfloat16)
        if name != "c1":   # c1 is already at output resolution -> no interp matrix
            kp[f"mw_{name}"] = jnp.asarray(_interp_matrix_1d(W1, w), jnp.bfloat16)
    shift = p["bn_beta"][0] + (b_total - p["bn_mean"][0]) * inv
    kp["bn_shift"] = jnp.zeros((1, E_pad), jnp.float32).at[0, :embed_dim].set(shift)
    wp = jnp.zeros((E_pad, CLS_pad), jnp.float32).at[:embed_dim, :num_classes].set(p["w_pred"])
    kp["w_pred"] = wp.astype(jnp.bfloat16)
    kp["b_pred"] = jnp.zeros((1, CLS_pad), jnp.float32).at[0, :num_classes].set(p["b_pred"][0])
    return kp


def decoder_head_forward(c1, c2, c3, c4, kp, row_tile=None, logits_dtype=jnp.float32):
    """Inputs: NCHW feature maps (c1 finest). Returns NCHW f32 logits."""
    N, _, H1, W1 = c1.shape
    ncls = kp["num_classes"]

    # bf16 NHWC activations: halves input DMA bytes and removes all in-kernel
    # transposes / casts (one cheap XLA transpose per level in the wrapper).
    def to_tok(x):
        return jnp.transpose(x, (0, 2, 3, 1)).astype(jnp.bfloat16)

    c1_tok = to_tok(c1)
    y2 = coarse_level_project_upsample(to_tok(c2), kp["wc_c2"], kp["mw_c2"])
    y3 = coarse_level_project_upsample(to_tok(c3), kp["wc_c3"], kp["mw_c3"])
    y4 = coarse_level_project_upsample(to_tok(c4), kp["wc_c4"], kp["mw_c4"])
    coarse_hs = (y2.shape[1], y3.shape[1], y4.shape[1])
    if row_tile is None:
        row_tile = _pick_row_tile(H1, W1, coarse_hs, _vmem_capacity_bytes())
    out_tok = fuse_pred(c1_tok, y2, y3, y4, kp, row_tile, out_dtype=logits_dtype)
    out = out_tok[:, :, :ncls].astype(jnp.float32).reshape(N, H1, W1, ncls)
    return jnp.transpose(out, (0, 3, 1, 2))                 # back to NCHW


def reference_forward(c1, c2, c3, c4, params):
    """Plain-JAX reference (dense kron interpolation, unfolded params) for verification."""
    feats = []
    for x, name in zip((c4, c3, c2, c1), ("c4", "c3", "c2", "c1")):
        y = _to_tokens(x) @ params[f"w_{name}"] + params[f"b_{name}"]
        feats.append(jnp.einsum("ol,nle->noe", params[f"M_{name}"], y))
    f4, f3, f2, f1 = feats
    z = (f4 @ params["wf_c4"] + f3 @ params["wf_c3"] + f2 @ params["wf_c2"]
         + f1 @ params["wf_c1"] + params["b_fuse"])
    inv = params["bn_gamma"] * jax.lax.rsqrt(params["bn_var"] + 1e-5)
    z = (z - params["bn_mean"]) * inv + params["bn_beta"]
    z = jnp.maximum(z, 0.0)
    out = z @ params["w_pred"] + params["b_pred"]
    N, _, H1, W1 = c1.shape
    return jnp.transpose(out.reshape(N, H1, W1, -1), (0, 3, 1, 2))


# ----------------------------------------------------------------------------
if __name__ == "__main__":
    # Small shapes consistent with the module (4 pyramid levels, c1 finest).
    N = 2
    embed_dim = 32
    num_classes = 8
    in_chs = (16, 32, 48, 64)                    # c1..c4 channels
    sizes = ((16, 16), (8, 8), (4, 4), (2, 2))   # c1..c4 spatial

    key = jax.random.PRNGKey(0)
    k_in, k_par = jax.random.split(key)
    kx = jax.random.split(k_in, 4)
    c1 = jax.random.normal(kx[0], (N, in_chs[0], *sizes[0]), jnp.float32)
    c2 = jax.random.normal(kx[1], (N, in_chs[1], *sizes[1]), jnp.float32)
    c3 = jax.random.normal(kx[2], (N, in_chs[2], *sizes[2]), jnp.float32)
    c4 = jax.random.normal(kx[3], (N, in_chs[3], *sizes[3]), jnp.float32)

    raw_params = init_params(k_par, in_chs, embed_dim, num_classes, sizes)
    kernel_params = prepare_kernel_params(raw_params, in_chs, embed_dim, num_classes, sizes)

    # row_tile=8 exercises the token-tiled (multi-row-band) path at toy scale.
    out = decoder_head_forward(c1, c2, c3, c4, kernel_params, row_tile=8)
    out = jax.block_until_ready(out)
    assert out.shape == (N, num_classes, sizes[0][0], sizes[0][1]), out.shape

    ref = jax.block_until_ready(reference_forward(c1, c2, c3, c4, raw_params))
    max_err = float(jnp.max(jnp.abs(out - ref)))
    assert max_err < 1e-2, f"max abs error {max_err}"

    print("KERNEL_OK")
</pallas_src>

<mosaic_0001>
module attributes {stable_mosaic.version = 11 : i64} {
  func.func @_coarse_level_kernel(%arg0: i32, %arg1: i32, %arg2: memref<1x8x8x32xbf16, #tpu.memory_space<vmem>>, %arg3: memref<16x8xbf16, #tpu.memory_space<vmem>>, %arg4: memref<32x128xbf16, #tpu.memory_space<vmem>>, %arg5: memref<1x8x16x128xbf16, #tpu.memory_space<vmem>>) attributes {dimension_semantics = [#tpu.dimension_semantics<parallel>, #tpu.dimension_semantics<parallel>], iteration_bounds = array<i64: 2, 1>, scalar_prefetch = 0 : i64, scratch_operands = 0 : i64, tpu.core_type = #tpu.core_type<tc>, window_params = [{transform_indices = @transform_0, window_bounds = array<i64: 1, 8, 8, 32>}, {pipeline_mode = #tpu.pipeline_mode<synchronous>, transform_indices = @transform_1, window_bounds = array<i64: 16, 8>}, {pipeline_mode = #tpu.pipeline_mode<synchronous>, transform_indices = @transform_2, window_bounds = array<i64: 32, 128>}, {transform_indices = @transform_3, window_bounds = array<i64: 1, 8, 16, 128>}]} {
    %c0 = arith.constant 0 : index
    %c0_0 = arith.constant 0 : index
    %c0_1 = arith.constant 0 : index
    %c0_2 = arith.constant 0 : index
    %0 = vector.load %arg2[%c0, %c0_0, %c0_1, %c0_2] : memref<1x8x8x32xbf16, #tpu.memory_space<vmem>>, vector<1x8x8x32xbf16>
    %1 = vector.shape_cast %0 : vector<1x8x8x32xbf16> to vector<8x8x32xbf16>
    %2 = vector.shape_cast %1 : vector<8x8x32xbf16> to vector<64x32xbf16>
    %c0_3 = arith.constant 0 : index
    %c0_4 = arith.constant 0 : index
    %3 = vector.load %arg4[%c0_3, %c0_4] : memref<32x128xbf16, #tpu.memory_space<vmem>>, vector<32x128xbf16>
    %cst = arith.constant dense<0.000000e+00> : vector<64x128xf32>
    %4 = tpu.matmul %2, %3, %cst {dimension_numbers = #tpu.dot_dimension_numbers<[1], [0], [0], [1], [0, 0, 1, 1], [], []>} : vector<64x32xbf16>, vector<32x128xbf16>, vector<64x128xf32> -> vector<64x128xf32>
    %5 = arith.truncf %4 : vector<64x128xf32> to vector<64x128xbf16>
    %6 = vector.shape_cast %5 : vector<64x128xbf16> to vector<8x8x128xbf16>
    %c0_5 = arith.constant 0 : index
    %c0_6 = arith.constant 0 : index
    %7 = vector.load %arg3[%c0_5, %c0_6] : memref<16x8xbf16, #tpu.memory_space<vmem>>, vector<16x8xbf16>
    %8 = vector.extract_strided_slice %6 {offsets = [0, 0, 0], sizes = [1, 8, 128], strides = [1, 1, 1]} : vector<8x8x128xbf16> to vector<1x8x128xbf16>
    %9 = vector.shape_cast %8 : vector<1x8x128xbf16> to vector<8x128xbf16>
    %cst_7 = arith.constant dense<0.000000e+00> : vector<16x128xf32>
    %10 = tpu.matmul %7, %9, %cst_7 {dimension_numbers = #tpu.dot_dimension_numbers<[1], [0], [0], [1], [0, 0, 1, 1], [], []>} : vector<16x8xbf16>, vector<8x128xbf16>, vector<16x128xf32> -> vector<16x128xf32>
    %11 = arith.truncf %10 : vector<16x128xf32> to vector<16x128xbf16>
    %c0_8 = arith.constant 0 : index
    %c0_9 = arith.constant 0 : index
    %c0_10 = arith.constant 0 : index
    %c0_11 = arith.constant 0 : index
    %12 = vector.load %arg5[%c0_8, %c0_9, %c0_10, %c0_11] : memref<1x8x16x128xbf16, #tpu.memory_space<vmem>>, vector<1x1x16x128xbf16>
    %13 = vector.shape_cast %12 : vector<1x1x16x128xbf16> to vector<16x128xbf16>
    %14 = vector.shape_cast %11 : vector<16x128xbf16> to vector<1x1x16x128xbf16>
    tpu.vector_store %arg5[%c0_8, %c0_9, %c0_10, %c0_11], %14 {strides = array<i32>} : memref<1x8x16x128xbf16, #tpu.memory_space<vmem>>, vector<1x1x16x128xbf16>,
    %c0_12 = arith.constant 0 : index
    %c0_13 = arith.constant 0 : index
    %15 = vector.load %arg3[%c0_12, %c0_13] : memref<16x8xbf16, #tpu.memory_space<vmem>>, vector<16x8xbf16>
    %16 = vector.extract_strided_slice %6 {offsets = [1, 0, 0], sizes = [1, 8, 128], strides = [1, 1, 1]} : vector<8x8x128xbf16> to vector<1x8x128xbf16>
    %17 = vector.shape_cast %16 : vector<1x8x128xbf16> to vector<8x128xbf16>
    %cst_14 = arith.constant dense<0.000000e+00> : vector<16x128xf32>
    %18 = tpu.matmul %15, %17, %cst_14 {dimension_numbers = #tpu.dot_dimension_numbers<[1], [0], [0], [1], [0, 0, 1, 1], [], []>} : vector<16x8xbf16>, vector<8x128xbf16>, vector<16x128xf32> -> vector<16x128xf32>
    %19 = arith.truncf %18 : vector<16x128xf32> to vector<16x128xbf16>
    %c0_15 = arith.constant 0 : index
    %c1 = arith.constant 1 : index
    %c0_16 = arith.constant 0 : index
    %c0_17 = arith.constant 0 : index
    %20 = vector.load %arg5[%c0_15, %c1, %c0_16, %c0_17] : memref<1x8x16x128xbf16, #tpu.memory_space<vmem>>, vector<1x1x16x128xbf16>
    %21 = vector.shape_cast %20 : vector<1x1x16x128xbf16> to vector<16x128xbf16>
    %22 = vector.shape_cast %19 : vector<16x128xbf16> to vector<1x1x16x128xbf16>
    tpu.vector_store %arg5[%c0_15, %c1, %c0_16, %c0_17], %22 {strides = array<i32>} : memref<1x8x16x128xbf16, #tpu.memory_space<vmem>>, vector<1x1x16x128xbf16>,
    %c0_18 = arith.constant 0 : index
    %c0_19 = arith.constant 0 : index
    %23 = vector.load %arg3[%c0_18, %c0_19] : memref<16x8xbf16, #tpu.memory_space<vmem>>, vector<16x8xbf16>
    %24 = vector.extract_strided_slice %6 {offsets = [2, 0, 0], sizes = [1, 8, 128], strides = [1, 1, 1]} : vector<8x8x128xbf16> to vector<1x8x128xbf16>
    %25 = vector.shape_cast %24 : vector<1x8x128xbf16> to vector<8x128xbf16>
    %cst_20 = arith.constant dense<0.000000e+00> : vector<16x128xf32>
    %26 = tpu.matmul %23, %25, %cst_20 {dimension_numbers = #tpu.dot_dimension_numbers<[1], [0], [0], [1], [0, 0, 1, 1], [], []>} : vector<16x8xbf16>, vector<8x128xbf16>, vector<16x128xf32> -> vector<16x128xf32>
    %27 = arith.truncf %26 : vector<16x128xf32> to vector<16x128xbf16>
    %c0_21 = arith.constant 0 : index
    %c2 = arith.constant 2 : index
    %c0_22 = arith.constant 0 : index
    %c0_23 = arith.constant 0 : index
    %28 = vector.load %arg5[%c0_21, %c2, %c0_22, %c0_23] : memref<1x8x16x128xbf16, #tpu.memory_space<vmem>>, vector<1x1x16x128xbf16>
    %29 = vector.shape_cast %28 : vector<1x1x16x128xbf16> to vector<16x128xbf16>
    %30 = vector.shape_cast %27 : vector<16x128xbf16> to vector<1x1x16x128xbf16>
    tpu.vector_store %arg5[%c0_21, %c2, %c0_22, %c0_23], %30 {strides = array<i32>} : memref<1x8x16x128xbf16, #tpu.memory_space<vmem>>, vector<1x1x16x128xbf16>,
    %c0_24 = arith.constant 0 : index
    %c0_25 = arith.constant 0 : index
    %31 = vector.load %arg3[%c0_24, %c0_25] : memref<16x8xbf16, #tpu.memory_space<vmem>>, vector<16x8xbf16>
    %32 = vector.extract_strided_slice %6 {offsets = [3, 0, 0], sizes = [1, 8, 128], strides = [1, 1, 1]} : vector<8x8x128xbf16> to vector<1x8x128xbf16>
    %33 = vector.shape_cast %32 : vector<1x8x128xbf16> to vector<8x128xbf16>
    %cst_26 = arith.constant dense<0.000000e+00> : vector<16x128xf32>
    %34 = tpu.matmul %31, %33, %cst_26 {dimension_numbers = #tpu.dot_dimension_numbers<[1], [0], [0], [1], [0, 0, 1, 1], [], []>} : vector<16x8xbf16>, vector<8x128xbf16>, vector<16x128xf32> -> vector<16x128xf32>
    %35 = arith.truncf %34 : vector<16x128xf32> to vector<16x128xbf16>
    %c0_27 = arith.constant 0 : index
    %c3 = arith.constant 3 : index
    %c0_28 = arith.constant 0 : index
    %c0_29 = arith.constant 0 : index
    %36 = vector.load %arg5[%c0_27, %c3, %c0_28, %c0_29] : memref<1x8x16x128xbf16, #tpu.memory_space<vmem>>, vector<1x1x16x128xbf16>
    %37 = vector.shape_cast %36 : vector<1x1x16x128xbf16> to vector<16x128xbf16>
    %38 = vector.shape_cast %35 : vector<16x128xbf16> to vector<1x1x16x128xbf16>
    tpu.vector_store %arg5[%c0_27, %c3, %c0_28, %c0_29], %38 {strides = array<i32>} : memref<1x8x16x128xbf16, #tpu.memory_space<vmem>>, vector<1x1x16x128xbf16>,
    %c0_30 = arith.constant 0 : index
    %c0_31 = arith.constant 0 : index
    %39 = vector.load %arg3[%c0_30, %c0_31] : memref<16x8xbf16, #tpu.memory_space<vmem>>, vector<16x8xbf16>
    %40 = vector.extract_strided_slice %6 {offsets = [4, 0, 0], sizes = [1, 8, 128], strides = [1, 1, 1]} : vector<8x8x128xbf16> to vector<1x8x128xbf16>
    %41 = vector.shape_cast %40 : vector<1x8x128xbf16> to vector<8x128xbf16>
    %cst_32 = arith.constant dense<0.000000e+00> : vector<16x128xf32>
    %42 = tpu.matmul %39, %41, %cst_32 {dimension_numbers = #tpu.dot_dimension_numbers<[1], [0], [0], [1], [0, 0, 1, 1], [], []>} : vector<16x8xbf16>, vector<8x128xbf16>, vector<16x128xf32> -> vector<16x128xf32>
    %43 = arith.truncf %42 : vector<16x128xf32> to vector<16x128xbf16>
    %c0_33 = arith.constant 0 : index
    %c4 = arith.constant 4 : index
    %c0_34 = arith.constant 0 : index
    %c0_35 = arith.constant 0 : index
    %44 = vector.load %arg5[%c0_33, %c4, %c0_34, %c0_35] : memref<1x8x16x128xbf16, #tpu.memory_space<vmem>>, vector<1x1x16x128xbf16>
    %45 = vector.shape_cast %44 : vector<1x1x16x128xbf16> to vector<16x128xbf16>
    %46 = vector.shape_cast %43 : vector<16x128xbf16> to vector<1x1x16x128xbf16>
    tpu.vector_store %arg5[%c0_33, %c4, %c0_34, %c0_35], %46 {strides = array<i32>} : memref<1x8x16x128xbf16, #tpu.memory_space<vmem>>, vector<1x1x16x128xbf16>,
    %c0_36 = arith.constant 0 : index
    %c0_37 = arith.constant 0 : index
    %47 = vector.load %arg3[%c0_36, %c0_37] : memref<16x8xbf16, #tpu.memory_space<vmem>>, vector<16x8xbf16>
    %48 = vector.extract_strided_slice %6 {offsets = [5, 0, 0], sizes = [1, 8, 128], strides = [1, 1, 1]} : vector<8x8x128xbf16> to vector<1x8x128xbf16>
    %49 = vector.shape_cast %48 : vector<1x8x128xbf16> to vector<8x128xbf16>
    %cst_38 = arith.constant dense<0.000000e+00> : vector<16x128xf32>
    %50 = tpu.matmul %47, %49, %cst_38 {dimension_numbers = #tpu.dot_dimension_numbers<[1], [0], [0], [1], [0, 0, 1, 1], [], []>} : vector<16x8xbf16>, vector<8x128xbf16>, vector<16x128xf32> -> vector<16x128xf32>
    %51 = arith.truncf %50 : vector<16x128xf32> to vector<16x128xbf16>
    %c0_39 = arith.constant 0 : index
    %c5 = arith.constant 5 : index
    %c0_40 = arith.constant 0 : index
    %c0_41 = arith.constant 0 : index
    %52 = vector.load %arg5[%c0_39, %c5, %c0_40, %c0_41] : memref<1x8x16x128xbf16, #tpu.memory_space<vmem>>, vector<1x1x16x128xbf16>
    %53 = vector.shape_cast %52 : vector<1x1x16x128xbf16> to vector<16x128xbf16>
    %54 = vector.shape_cast %51 : vector<16x128xbf16> to vector<1x1x16x128xbf16>
    tpu.vector_store %arg5[%c0_39, %c5, %c0_40, %c0_41], %54 {strides = array<i32>} : memref<1x8x16x128xbf16, #tpu.memory_space<vmem>>, vector<1x1x16x128xbf16>,
    %c0_42 = arith.constant 0 : index
    %c0_43 = arith.constant 0 : index
    %55 = vector.load %arg3[%c0_42, %c0_43] : memref<16x8xbf16, #tpu.memory_space<vmem>>, vector<16x8xbf16>
    %56 = vector.extract_strided_slice %6 {offsets = [6, 0, 0], sizes = [1, 8, 128], strides = [1, 1, 1]} : vector<8x8x128xbf16> to vector<1x8x128xbf16>
    %57 = vector.shape_cast %56 : vector<1x8x128xbf16> to vector<8x128xbf16>
    %cst_44 = arith.constant dense<0.000000e+00> : vector<16x128xf32>
    %58 = tpu.matmul %55, %57, %cst_44 {dimension_numbers = #tpu.dot_dimension_numbers<[1], [0], [0], [1], [0, 0, 1, 1], [], []>} : vector<16x8xbf16>, vector<8x128xbf16>, vector<16x128xf32> -> vector<16x128xf32>
    %59 = arith.truncf %58 : vector<16x128xf32> to vector<16x128xbf16>
    %c0_45 = arith.constant 0 : index
    %c6 = arith.constant 6 : index
    %c0_46 = arith.constant 0 : index
    %c0_47 = arith.constant 0 : index
    %60 = vector.load %arg5[%c0_45, %c6, %c0_46, %c0_47] : memref<1x8x16x128xbf16, #tpu.memory_space<vmem>>, vector<1x1x16x128xbf16>
    %61 = vector.shape_cast %60 : vector<1x1x16x128xbf16> to vector<16x128xbf16>
    %62 = vector.shape_cast %59 : vector<16x128xbf16> to vector<1x1x16x128xbf16>
    tpu.vector_store %arg5[%c0_45, %c6, %c0_46, %c0_47], %62 {strides = array<i32>} : memref<1x8x16x128xbf16, #tpu.memory_space<vmem>>, vector<1x1x16x128xbf16>,
    %c0_48 = arith.constant 0 : index
    %c0_49 = arith.constant 0 : index
    %63 = vector.load %arg3[%c0_48, %c0_49] : memref<16x8xbf16, #tpu.memory_space<vmem>>, vector<16x8xbf16>
    %64 = vector.extract_strided_slice %6 {offsets = [7, 0, 0], sizes = [1, 8, 128], strides = [1, 1, 1]} : vector<8x8x128xbf16> to vector<1x8x128xbf16>
    %65 = vector.shape_cast %64 : vector<1x8x128xbf16> to vector<8x128xbf16>
    %cst_50 = arith.constant dense<0.000000e+00> : vector<16x128xf32>
    %66 = tpu.matmul %63, %65, %cst_50 {dimension_numbers = #tpu.dot_dimension_numbers<[1], [0], [0], [1], [0, 0, 1, 1], [], []>} : vector<16x8xbf16>, vector<8x128xbf16>, vector<16x128xf32> -> vector<16x128xf32>
    %67 = arith.truncf %66 : vector<16x128xf32> to vector<16x128xbf16>
    %c0_51 = arith.constant 0 : index
    %c7 = arith.constant 7 : index
    %c0_52 = arith.constant 0 : index
    %c0_53 = arith.constant 0 : index
    %68 = vector.load %arg5[%c0_51, %c7, %c0_52, %c0_53] : memref<1x8x16x128xbf16, #tpu.memory_space<vmem>>, vector<1x1x16x128xbf16>
    %69 = vector.shape_cast %68 : vector<1x1x16x128xbf16> to vector<16x128xbf16>
    %70 = vector.shape_cast %67 : vector<16x128xbf16> to vector<1x1x16x128xbf16>
    tpu.vector_store %arg5[%c0_51, %c7, %c0_52, %c0_53], %70 {strides = array<i32>} : memref<1x8x16x128xbf16, #tpu.memory_space<vmem>>, vector<1x1x16x128xbf16>,
    return
  }
  func.func @transform_0(%arg0: i32, %arg1: i32) -> (i32, i32, i32, i32) {
    %c0_i32 = arith.constant 0 : i32
    %c0_i32_0 = arith.constant 0 : i32
    %c0_i32_1 = arith.constant 0 : i32
    return %arg0, %arg1, %c0_i32, %c0_i32_0 : i32, i32, i32, i32
  }
  func.func @transform_1(%arg0: i32, %arg1: i32) -> (i32, i32) {
    %c0_i32 = arith.constant 0 : i32
    %c0_i32_0 = arith.constant 0 : i32
    %c0_i32_1 = arith.constant 0 : i32
    return %c0_i32, %c0_i32_0 : i32, i32
  }
  func.func @transform_2(%arg0: i32, %arg1: i32) -> (i32, i32) {
    %c0_i32 = arith.constant 0 : i32
    %c0_i32_0 = arith.constant 0 : i32
    %c0_i32_1 = arith.constant 0 : i32
    return %c0_i32, %c0_i32_0 : i32, i32
  }
  func.func @transform_3(%arg0: i32, %arg1: i32) -> (i32, i32, i32, i32) {
    %c0_i32 = arith.constant 0 : i32
    %c0_i32_0 = arith.constant 0 : i32
    %c0_i32_1 = arith.constant 0 : i32
    return %arg0, %arg1, %c0_i32, %c0_i32_0 : i32, i32, i32, i32
  }
}

</mosaic_0001>

<llo_original>
// kernel: tpu_custom_call.1
$region0: #{tpu_custom_call.1}
  #allocation0 [shape = 'u32[]', space=smem, size = 0x4, offset = 0x4, fixed_abs, tag = 'smem constant byte address 0x4 - core index']
  #allocation1 [shape = 'u32[144,128]{1,0:T(1,128)}', space=vmem, size = 0x12000, scoped, tag = 'internal scratch']
  %s0 = inlined_call_operand.hbm [shape: bf16[2,8,8,32], index: 0, kind: input, shape index: {}]
  %s1 = inlined_call_operand.vmem [shape: bf16[16,8], index: 1, kind: input, shape index: {}]
  %s2 = inlined_call_operand.vmem [shape: bf16[32,128], index: 2, kind: input, shape index: {}]
  %s3 = inlined_call_operand.hbm [shape: bf16[2,8,16,128], index: 3, kind: output, shape index: {}]
  %s4 = sld [smem:[#allocation0]]
  $region49: #{tpu_custom_call.1} parent=0
    _
  %s6 = ssub.s32 1, %s4
  %s7 = scalar_select 0, %s6, %s4
  $region1: #{tpu_custom_call.1} parent=0
    #allocation2 [shape = 'u8[32768]{0}', space=vmem, size = 0x8000, scoped, tag = 'input window, operand 0']
    #allocation3 [shape = 's32[2]{0}', space=sflag, size = 0x8, scoped, tag = 'scoped memory for tpu_custom_call.1']
    #allocation4 [shape = 's32[2]{0}', space=sflag, size = 0x8, scoped, tag = 'scoped memory for tpu_custom_call.1']
    #allocation5 [shape = 'u8[65536]{0}', space=vmem, size = 0x10000, scoped, tag = 'output window, operand 0']
    %8 = vsyncpa [#allocation3], 0
    %s9 = scalar_lea.sflag [#allocation3], 1
    %10 = vsyncpa %s9, 0
    %11 = vsyncpa [#allocation4], 0
    %s12 = scalar_lea.sflag [#allocation4], 1
    %13 = vsyncpa %s12, 0
    loop: start=0, step=1, limit=4
    $region2: #{tpu_custom_call.1} parent=1 // loop_pre_header
      _
    $region3: #{tpu_custom_call.1} parent=1 // loop_header
      %s15 = sphi 0, %s19
      %p16 = scmp.ge.s32.totalorder %s15, 4
      %s22 = sphi 0, %s34
      %s23 = sphi 0, %s30
      %s24 = sphi 0, %s22
      %s25 = sphi 0, %s23
      %s26 = sphi 0, %s24
      %s27 = sphi 0, %s25
      %s39 = sphi 0, %s41
      %s42 = sphi 0, %s39
      %s43 = sphi 0, %s42
      %s59 = sphi 0, %s43
      %s63 = sphi 0, %s63
      %s65 = sphi 0, %s63
      %s66 = sphi 0, %s65
      %s80 = sphi 0, %s66
      %s84 = sphi 0, %s84
      %s86 = sphi 0, %s84
      %s87 = sphi 0, %s86
      %s101 = sphi 0, %s87
      %s109 = sphi 0, %s111
      %s112 = sphi 0, %s109
      %s113 = sphi 0, %s112
      %s129 = sphi 0, %s113
    $region4: #{tpu_custom_call.1} parent=1 // loop_header_branch
      %18 = sbr.rel (%p16) target = $region8
    $region5: #{tpu_custom_call.1} parent=1 // loop_body
      %s20 = ssub.s32 %s15, 1
      %s21 = ssub.s32 %s15, 2
      %s28 = sadd.s32 1, %s23
      %p29 = scmp.ge.s32.totalorder %s28, 1
      %s30 = scalar_select %p29, 0, %s28
      %s31 = sadd.s32 1, %s22
      %s32 = scalar_select %p29, %s31, %s22
      %p33 = scmp.ge.s32.totalorder %s32, 2
      %s34 = scalar_select %p33, 0, %s32
      %s35 = ssub.s32 %s22, %s34
      %s36 = ssub.s32 %s23, %s30
      %s37 = sor.u32 %s35, %s36
      %p38 = scmp.eq.s32.totalorder %s37, 0
      %s40 = sadd.s32 %s39, 1
      %s41 = scalar_select %p38, %s39, %s40
      %p44 = pneg %p38
      %p45 = scmp.eq.s32.totalorder %s15, 1
      %p46 = por %p44, %p45
      %p47 = scmp.ne.s32.totalorder %s39, %s42
      %p48 = scmp.eq.s32.totalorder %s15, 0
      %p49 = por %p47, %p48
      %p50 = scmp.ne.s32.totalorder %s39, %s42
      %p51 = scmp.eq.s32.totalorder %s20, 1
      %p52 = por %p50, %p51
      %p53 = scmp.ne.s32.totalorder %s42, %s43
      %p54 = scmp.eq.s32.totalorder %s20, 0
      %p55 = por %p53, %p54
      %p56 = scmp.ne.s32.totalorder %s42, %s43
      %p57 = scmp.eq.s32.totalorder %s21, 1
      %p58 = por %p56, %p57
      %p60 = scmp.ne.s32.totalorder %s43, %s59
      %p61 = scmp.eq.s32.totalorder %s21, 0
      %p62 = por %p60, %p61
      %s64 = sadd.s32 %s63, 1
      %p67 = scmp.eq.s32.totalorder %s15, 1
      %p68 = scmp.ne.s32.totalorder %s63, %s65
      %p69 = scmp.eq.s32.totalorder %s15, 0
      %p70 = por %p68, %p69
      %p71 = scmp.ne.s32.totalorder %s63, %s65
      %p72 = scmp.eq.s32.totalorder %s20, 1
      %p73 = por %p71, %p72
      %p74 = scmp.ne.s32.totalorder %s65, %s66
      %p75 = scmp.eq.s32.totalorder %s20, 0
      %p76 = por %p74, %p75
      %p77 = scmp.ne.s32.totalorder %s65, %s66
      %p78 = scmp.eq.s32.totalorder %s21, 1
      %p79 = por %p77, %p78
      %p81 = scmp.ne.s32.totalorder %s66, %s80
      %p82 = scmp.eq.s32.totalorder %s21, 0
      %p83 = por %p81, %p82
      %s85 = sadd.s32 %s84, 1
      %p88 = scmp.eq.s32.totalorder %s15, 1
      %p89 = scmp.ne.s32.totalorder %s84, %s86
      %p90 = scmp.eq.s32.totalorder %s15, 0
      %p91 = por %p89, %p90
      %p92 = scmp.ne.s32.totalorder %s84, %s86
      %p93 = scmp.eq.s32.totalorder %s20, 1
      %p94 = por %p92, %p93
      %p95 = scmp.ne.s32.totalorder %s86, %s87
      %p96 = scmp.eq.s32.totalorder %s20, 0
      %p97 = por %p95, %p96
      %p98 = scmp.ne.s32.totalorder %s86, %s87
      %p99 = scmp.eq.s32.totalorder %s21, 1
      %p100 = por %p98, %p99
      %p102 = scmp.ne.s32.totalorder %s87, %s101
      %p103 = scmp.eq.s32.totalorder %s21, 0
      %p104 = por %p102, %p103
      %s105 = ssub.s32 %s22, %s34
      %s106 = ssub.s32 %s23, %s30
      %s107 = sor.u32 %s105, %s106
      %p108 = scmp.eq.s32.totalorder %s107, 0
      %s110 = sadd.s32 %s109, 1
      %s111 = scalar_select %p108, %s109, %s110
      %p114 = pneg %p108
      %p115 = scmp.eq.s32.totalorder %s15, 1
      %p116 = por %p114, %p115
      %p117 = scmp.ne.s32.totalorder %s109, %s112
      %p118 = scmp.eq.s32.totalorder %s15, 0
      %p119 = por %p117, %p118
      %p120 = scmp.ne.s32.totalorder %s109, %s112
      %p121 = scmp.eq.s32.totalorder %s20, 1
      %p122 = por %p120, %p121
      %p123 = scmp.ne.s32.totalorder %s112, %s113
      %p124 = scmp.eq.s32.totalorder %s20, 0
      %p125 = por %p123, %p124
      %p126 = scmp.ne.s32.totalorder %s112, %s113
      %p127 = scmp.eq.s32.totalorder %s21, 1
      %p128 = por %p126, %p127
      %p130 = scmp.ne.s32.totalorder %s113, %s129
      %p131 = scmp.eq.s32.totalorder %s21, 0
      %p132 = por %p130, %p131
      %p133 = scmp.le.s32.totalorder 1, %s15
      %p134 = scmp.lt.s32.totalorder %s15, 3
      %p135 = pnand %p133, %p134
      %p136 = pneg %p135
      // Predicated region
      $region9: #{tpu_custom_call.1} parent=5 // pred_check
        _
      $region10: #{tpu_custom_call.1} parent=5 // pred_check_branch
        %138 = sbr.rel (%p135) target = $region12
      $region11: #{tpu_custom_call.1} parent=5 // pred_region
        %s139 = ssub.s32 %s15, 1
        // Predicated region
        $region13: #{tpu_custom_call.1} parent=11 // pred_check
          %p140 = pneg %p76
        $region14: #{tpu_custom_call.1} parent=11 // pred_check_branch
          %142 = sbr.rel (%p140) target = $region16
        $region15: #{tpu_custom_call.1} parent=11 // pred_region
          _
        $region16: #{tpu_custom_call.1} parent=11 // pred_fallthru
          _
        // Predicated region
        $region17: #{tpu_custom_call.1} parent=11 // pred_check
          %p143 = pneg %p97
        $region18: #{tpu_custom_call.1} parent=11 // pred_check_branch
          %145 = sbr.rel (%p143) target = $region20
        $region19: #{tpu_custom_call.1} parent=11 // pred_region
          _
        $region20: #{tpu_custom_call.1} parent=11 // pred_fallthru
          _
      $region12: #{tpu_custom_call.1} parent=5 // pred_fallthru
        _
      %p146 = scmp.lt.s32.totalorder %s15, 2
      // Predicated region
      $region21: #{tpu_custom_call.1} parent=5 // pred_check
        %p147 = pneg %p146
      $region22: #{tpu_custom_call.1} parent=5 // pred_check_branch
        %149 = sbr.rel (%p147) target = $region24
      $region23: #{tpu_custom_call.1} parent=5 // pred_region
        // Predicated region
        $region25: #{tpu_custom_call.1} parent=23 // pred_check
          %p150 = pneg %p49
        $region26: #{tpu_custom_call.1} parent=23 // pred_check_branch
          %152 = sbr.rel (%p150) target = $region28
        $region27: #{tpu_custom_call.1} parent=23 // pred_region
          %s153 = sand.u32 %s39, 1
          %s154 = scalar_lea.sflag [#allocation3], %s153
          %s155 = sand.u32 %s39, 1
          %s156 = smul.addr %s155, 32
          %s157 = scalar_lea.vmem [#allocation2], %s156
          %s158 = smul.u32 8, %s23
          %s160 = ssub.s32 512, 512
          %161 = vsyncadd %s154, %s160
          %s162 = smul.addr %s22, 8
          %s163 = sadd.s32 %s158, %s162
          %s164 = smul.addr %s163, 64
          %s165 = scalar_lea.hbm %s0, %s164
          %s166 = sshll.u32 %s157, 4
          %s167 = int_to_ptr.vmem [resolvable:$true] %s166
          %172 = dma.hbm_to_vmem [thread:$0]  %s165, 512, %s167, %s154, 64, 64, 4
        $region28: #{tpu_custom_call.1} parent=23 // pred_fallthru
          _
      $region24: #{tpu_custom_call.1} parent=5 // pred_fallthru
        _
      %p173 = scmp.le.s32.totalorder 1, %s15
      %p174 = scmp.lt.s32.totalorder %s15, 3
      %p175 = pnand %p173, %p174
      %p176 = pneg %p175
      // Predicated region
      $region29: #{tpu_custom_call.1} parent=5 // pred_check
        _
      $region30: #{tpu_custom_call.1} parent=5 // pred_check_branch
        %178 = sbr.rel (%p175) target = $region32
      $region31: #{tpu_custom_call.1} parent=5 // pred_region
        %s179 = ssub.s32 %s15, 1
        %s180 = sand.u32 %s42, 1
        %s181 = scalar_lea.sflag [#allocation3], %s180
        %s182 = sand.u32 %s42, 1
        %s183 = smul.addr %s182, 32
        %s184 = scalar_lea.vmem [#allocation2], %s183
        // Predicated region
        $region33: #{tpu_custom_call.1} parent=31 // pred_check
          %p185 = pneg %p55
        $region34: #{tpu_custom_call.1} parent=31 // pred_check_branch
          %187 = sbr.rel (%p185) target = $region36
        $region35: #{tpu_custom_call.1} parent=31 // pred_region
          %188 = dma.done %s181, 512
        $region36: #{tpu_custom_call.1} parent=31 // pred_fallthru
          _
        %s189 = sand.u32 %s42, 1
        %s190 = scalar_lea.sflag [#allocation3], %s189
        %s191 = sand.u32 %s42, 1
        %s192 = smul.addr %s191, 32
        %s193 = scalar_lea.vmem [#allocation2], %s192
        %p194 = pneg %p55
        %p195 = pneg %p52
        %p196 = pneg %p76
        %p197 = pneg %p73
        %p198 = pneg %p97
        %p199 = pneg %p94
        %p200 = pneg %p125
        %p201 = pneg %p122
        %s202 = sand.u32 %s112, 1
        %s203 = scalar_lea.sflag [#allocation4], %s202
        %s204 = sand.u32 %s112, 1
        %s205 = smul.addr %s204, 64
        %s206 = scalar_lea.vmem [#allocation5], %s205
        %s207 = smul.u32 8, %s25
        %s208 = smul.u32 8, %s25
        %v210 = vld [vmem:[%s184] sm:$0xf]
        %v211 = vld [vmem:[%s184 + $0x4] sm:$0xf]
        %v212 = vld [vmem:[%s184 + $0x8] sm:$0xf]
        %v213 = vld [vmem:[%s184 + $0xc] sm:$0xf]
        %v214 = vld [vmem:[%s184 + $0x10] sm:$0xf]
        %v215 = vld [vmem:[%s184 + $0x14] sm:$0xf]
        %v216 = vld [vmem:[%s184 + $0x18] sm:$0xf]
        %v217 = vld [vmem:[%s184 + $0x1c] sm:$0xf]
        %v218 = vld [vmem:[%s2] sm:$0xf]
        %v219 = vld [vmem:[%s2 + $0x4] sm:$0xf]
        %v220 = vld [vmem:[%s2 + $0x8] sm:$0xf]
        %v221 = vld [vmem:[%s2 + $0xc] sm:$0xf]
        %v230 = vunpack.c.l.b16 %v210
        %v231 = vunpack.c.l.b16 %v211
        %v232 = vunpack.c.l.b16 %v212
        %v233 = vunpack.c.l.b16 %v213
        %v234 = vunpack.c.l.b16 %v214
        %v235 = vunpack.c.l.b16 %v215
        %v236 = vunpack.c.l.b16 %v216
        %v237 = vunpack.c.l.b16 %v217
        %v238 = vpack.c.b16 %v231, %v230
        %v239 = vpack.c.b16 %v233, %v232
        %v240 = vpack.c.b16 %v235, %v234
        %v241 = vpack.c.b16 %v237, %v236
        %v246 = vunpack.c.l.b16 %v218
        %v247 = vunpack.c.l.b16 %v219
        %v248 = vunpack.c.l.b16 %v220
        %v249 = vunpack.c.l.b16 %v221
        %v250 = vpack.c.b16 %v247, %v246
        %v251 = vpack.c.b16 %v249, %v248
        %vm254 = vcmask 261120
        %v256 = vsel %vm254, %v238, 0
        %v259 = vsel %vm254, %v239, 0
        %v262 = vsel %vm254, %v240, 0
        %v265 = vsel %vm254, %v241, 0
        %267 = vmatprep.subr.bf16.mxu0 0
        %268 = vmatpush1.bf16.msra.mxu0 %v250
        %269 = vmatprep.subr.bf16.mxu0 0
        %270 = vmatpush1.bf16.msra.mxu0 %v251
        %271 = vmatprep.subr.bf16.mxu0 0
        %272 = vmatpush1.bf16.msra.mxu0 0
        %273 = vmatprep.subr.bf16.mxu0 0
        %274 = vmatpush1.bf16.msra.mxu0 0
        %275 = vmatprep.subr.bf16.mxu0 0
        %276 = vmatpush1.bf16.msra.mxu0 0
        %277 = vmatprep.subr.bf16.mxu0 0
        %278 = vmatpush1.bf16.msra.mxu0 0
        %279 = vmatprep.subr.bf16.mxu0 0
        %280 = vmatpush1.bf16.msra.mxu0 0
        %281 = vmatprep.subr.bf16.mxu0 0
        %282 = vmatpush1.bf16.msra.mxu0 0
        %283 = vmatprep.subr.bf16.mxu0 0
        %284 = vmatpush1.bf16.msra.mxu0 0
        %285 = vmatprep.subr.bf16.mxu0 0
        %286 = vmatpush1.bf16.msra.mxu0 0
        %287 = vmatprep.subr.bf16.mxu0 0
        %288 = vmatpush1.bf16.msra.mxu0 0
        %289 = vmatprep.subr.bf16.mxu0 0
        %290 = vmatpush1.bf16.msra.mxu0 0
        %291 = vmatprep.subr.bf16.mxu0 0
        %292 = vmatpush1.bf16.msra.mxu0 0
        %293 = vmatprep.subr.bf16.mxu0 0
        %294 = vmatpush1.bf16.msra.mxu0 0
        %295 = vmatprep.subr.bf16.mxu0 0
        %296 = vmatpush1.bf16.msra.mxu0 0
        %297 = vmatprep.subr.bf16.mxu0 0
        %298 = vmatpush1.bf16.msra.mxu0 0
        %299 = vmatprep.mubr.bf16.mxu0 0
        %300 = vmatmul.mubr.bf16.gmra.mrb[0].mxu0 %v256
        %v301 = vpop.f32.mrb[0].mxu0
        %v302 = vadd.f32 0.0, %v301
        %v303 = vpop.f32.mrb[0].mxu0
        %v304 = vpop.f32.mrb[0].mxu0
        %v305 = vadd.f32 0.0, %v304
        %v306 = vpop.f32.mrb[0].mxu0
        %307 = vmatprep.mubr.bf16.mxu0 0
        %308 = vmatmul.mubr.bf16.gmra.mrb[0].mxu0 %v259
        %v309 = vpop.f32.mrb[0].mxu0
        %v310 = vadd.f32 0.0, %v309
        %v311 = vpop.f32.mrb[0].mxu0
        %v312 = vpop.f32.mrb[0].mxu0
        %v313 = vadd.f32 0.0, %v312
        %v314 = vpop.f32.mrb[0].mxu0
        %315 = vmatprep.mubr.bf16.mxu0 0
        %316 = vmatmul.mubr.bf16.gmra.mrb[0].mxu0 %v262
        %v317 = vpop.f32.mrb[0].mxu0
        %v318 = vadd.f32 0.0, %v317
        %v319 = vpop.f32.mrb[0].mxu0
        %v320 = vpop.f32.mrb[0].mxu0
        %v321 = vadd.f32 0.0, %v320
        %v322 = vpop.f32.mrb[0].mxu0
        %323 = vmatprep.mubr.bf16.mxu0 0
        %324 = vmatmul.mubr.bf16.gmra.mrb[0].mxu0 %v265
        %v325 = vpop.f32.mrb[0].mxu0
        %v326 = vadd.f32 0.0, %v325
        %v327 = vpop.f32.mrb[0].mxu0
        %v328 = vpop.f32.mrb[0].mxu0
        %v329 = vadd.f32 0.0, %v328
        %v330 = vpop.f32.mrb[0].mxu0
        %331 = vdwg.mxu0
        %v332 = vpack.c.bf16 %v305, %v302
        %v333 = vpack.c.bf16 %v313, %v310
        %v334 = vpack.c.bf16 %v321, %v318
        %v335 = vpack.c.bf16 %v329, %v326
        %v340 = vunpack.c.l.b16 %v332
        %v341 = vunpack.c.h.b16 %v332
        %v342 = vunpack.c.l.b16 %v333
        %v343 = vunpack.c.h.b16 %v333
        %v344 = vunpack.c.l.b16 %v334
        %v345 = vunpack.c.h.b16 %v334
        %v346 = vunpack.c.l.b16 %v335
        %v347 = vunpack.c.h.b16 %v335
        %v348 = vpack.c.b16 %v340, %v340
        %v349 = vpack.c.b16 %v341, %v341
        %v350 = vpack.c.b16 %v342, %v342
        %v351 = vpack.c.b16 %v343, %v343
        %v352 = vpack.c.b16 %v344, %v344
        %v353 = vpack.c.b16 %v345, %v345
        %v354 = vpack.c.b16 %v346, %v346
        %v355 = vpack.c.b16 %v347, %v347
        %v356 = vld [vmem:[%s1] sm:$0xf]
        %v357 = vld [vmem:[%s1 + $0x4] sm:$0xf]
        %v360 = vunpack.c.l.b16 %v356
        %v361 = vunpack.c.l.b16 %v357
        %v362 = vpack.c.b16 %v361, %v360
        %vm363 = vcmask 64512
        %v365 = vsel %vm363, %v362, 0
        %vm367 = vcmask 1043456
        %v369 = vsel %vm367, %v348, 0
        %371 = vmatprep.subr.bf16.mxu0 0
        %372 = vmatpush1.bf16.msra.mxu0 %v369
        %373 = vmatprep.subr.bf16.mxu0 0
        %374 = vmatpush1.bf16.msra.mxu0 0
        %375 = vmatprep.subr.bf16.mxu0 0
        %376 = vmatpush1.bf16.msra.mxu0 0
        %377 = vmatprep.subr.bf16.mxu0 0
        %378 = vmatpush1.bf16.msra.mxu0 0
        %379 = vmatprep.subr.bf16.mxu0 0
        %380 = vmatpush1.bf16.msra.mxu0 0
        %381 = vmatprep.subr.bf16.mxu0 0
        %382 = vmatpush1.bf16.msra.mxu0 0
        %383 = vmatprep.subr.bf16.mxu0 0
        %384 = vmatpush1.bf16.msra.mxu0 0
        %385 = vmatprep.subr.bf16.mxu0 0
        %386 = vmatpush1.bf16.msra.mxu0 0
        %387 = vmatprep.subr.bf16.mxu0 0
        %388 = vmatpush1.bf16.msra.mxu0 0
        %389 = vmatprep.subr.bf16.mxu0 0
        %390 = vmatpush1.bf16.msra.mxu0 0
        %391 = vmatprep.subr.bf16.mxu0 0
        %392 = vmatpush1.bf16.msra.mxu0 0
        %393 = vmatprep.subr.bf16.mxu0 0
        %394 = vmatpush1.bf16.msra.mxu0 0
        %395 = vmatprep.subr.bf16.mxu0 0
        %396 = vmatpush1.bf16.msra.mxu0 0
        %397 = vmatprep.subr.bf16.mxu0 0
        %398 = vmatpush1.bf16.msra.mxu0 0
        %399 = vmatprep.subr.bf16.mxu0 0
        %400 = vmatpush1.bf16.msra.mxu0 0
        %401 = vmatprep.subr.bf16.mxu0 0
        %402 = vmatpush1.bf16.msra.mxu0 0
        %403 = vmatprep.mubr.bf16.mxu0 0
        %404 = vmatmul.mubr.bf16.gmra.mrb[0].mxu0 %v365
        %v405 = vpop.f32.mrb[0].mxu0
        %v406 = vadd.f32 0.0, %v405
        %v407 = vpop.f32.mrb[0].mxu0
        %v408 = vpop.f32.mrb[0].mxu0
        %v409 = vadd.f32 0.0, %v408
        %v410 = vpop.f32.mrb[0].mxu0
        %411 = vdwg.mxu0
        %v412 = vpack.c.bf16 %v409, %v406
        %v414 = vunpack.c.l.b16 %v412
        %v415 = vunpack.c.h.b16 %v412
        %v416 = vpack.c.b16 %v414, %v414
        %v417 = vpack.c.b16 %v415, %v415
        %420 = vst [vmem:[%s206] sm:$0xf] %v416
        %421 = vst [vmem:[%s206 + $0x4] sm:$0xf] %v417
        %v422 = vld [vmem:[%s1] sm:$0xf]
        %v423 = vld [vmem:[%s1 + $0x4] sm:$0xf]
        %v426 = vunpack.c.l.b16 %v422
        %v427 = vunpack.c.l.b16 %v423
        %v428 = vpack.c.b16 %v427, %v426
        %v430 = vsel %vm363, %v428, 0
        %v433 = vsel %vm367, %v349, 0
        %435 = vmatprep.subr.bf16.mxu0 0
        %436 = vmatpush1.bf16.msra.mxu0 %v433
        %437 = vmatprep.subr.bf16.mxu0 0
        %438 = vmatpush1.bf16.msra.mxu0 0
        %439 = vmatprep.subr.bf16.mxu0 0
        %440 = vmatpush1.bf16.msra.mxu0 0
        %441 = vmatprep.subr.bf16.mxu0 0
        %442 = vmatpush1.bf16.msra.mxu0 0
        %443 = vmatprep.subr.bf16.mxu0 0
        %444 = vmatpush1.bf16.msra.mxu0 0
        %445 = vmatprep.subr.bf16.mxu0 0
        %446 = vmatpush1.bf16.msra.mxu0 0
        %447 = vmatprep.subr.bf16.mxu0 0
        %448 = vmatpush1.bf16.msra.mxu0 0
        %449 = vmatprep.subr.bf16.mxu0 0
        %450 = vmatpush1.bf16.msra.mxu0 0
        %451 = vmatprep.subr.bf16.mxu0 0
        %452 = vmatpush1.bf16.msra.mxu0 0
        %453 = vmatprep.subr.bf16.mxu0 0
        %454 = vmatpush1.bf16.msra.mxu0 0
        %455 = vmatprep.subr.bf16.mxu0 0
        %456 = vmatpush1.bf16.msra.mxu0 0
        %457 = vmatprep.subr.bf16.mxu0 0
        %458 = vmatpush1.bf16.msra.mxu0 0
        %459 = vmatprep.subr.bf16.mxu0 0
        %460 = vmatpush1.bf16.msra.mxu0 0
        %461 = vmatprep.subr.bf16.mxu0 0
        %462 = vmatpush1.bf16.msra.mxu0 0
        %463 = vmatprep.subr.bf16.mxu0 0
        %464 = vmatpush1.bf16.msra.mxu0 0
        %465 = vmatprep.subr.bf16.mxu0 0
        %466 = vmatpush1.bf16.msra.mxu0 0
        %467 = vmatprep.mubr.bf16.mxu0 0
        %468 = vmatmul.mubr.bf16.gmra.mrb[0].mxu0 %v430
        %v469 = vpop.f32.mrb[0].mxu0
        %v470 = vadd.f32 0.0, %v469
        %v471 = vpop.f32.mrb[0].mxu0
        %v472 = vpop.f32.mrb[0].mxu0
        %v473 = vadd.f32 0.0, %v472
        %v474 = vpop.f32.mrb[0].mxu0
        %475 = vdwg.mxu0
        %v476 = vpack.c.bf16 %v473, %v470
        %v478 = vunpack.c.l.b16 %v476
        %v479 = vunpack.c.h.b16 %v476
        %v480 = vpack.c.b16 %v478, %v478
        %v481 = vpack.c.b16 %v479, %v479
        %s484 = scalar_lea.vmem %s206, 8 [#allocation5]
        %485 = vst [vmem:[%s484] sm:$0xf] %v480
        %486 = vst [vmem:[%s484 + $0x4] sm:$0xf] %v481
        %v487 = vld [vmem:[%s1] sm:$0xf]
        %v488 = vld [vmem:[%s1 + $0x4] sm:$0xf]
        %v491 = vunpack.c.l.b16 %v487
        %v492 = vunpack.c.l.b16 %v488
        %v493 = vpack.c.b16 %v492, %v491
        %v495 = vsel %vm363, %v493, 0
        %v498 = vsel %vm367, %v350, 0
        %500 = vmatprep.subr.bf16.mxu0 0
        %501 = vmatpush1.bf16.msra.mxu0 %v498
        %502 = vmatprep.subr.bf16.mxu0 0
        %503 = vmatpush1.bf16.msra.mxu0 0
        %504 = vmatprep.subr.bf16.mxu0 0
        %505 = vmatpush1.bf16.msra.mxu0 0
        %506 = vmatprep.subr.bf16.mxu0 0
        %507 = vmatpush1.bf16.msra.mxu0 0
        %508 = vmatprep.subr.bf16.mxu0 0
        %509 = vmatpush1.bf16.msra.mxu0 0
        %510 = vmatprep.subr.bf16.mxu0 0
        %511 = vmatpush1.bf16.msra.mxu0 0
        %512 = vmatprep.subr.bf16.mxu0 0
        %513 = vmatpush1.bf16.msra.mxu0 0
        %514 = vmatprep.subr.bf16.mxu0 0
        %515 = vmatpush1.bf16.msra.mxu0 0
        %516 = vmatprep.subr.bf16.mxu0 0
        %517 = vmatpush1.bf16.msra.mxu0 0
        %518 = vmatprep.subr.bf16.mxu0 0
        %519 = vmatpush1.bf16.msra.mxu0 0
        %520 = vmatprep.subr.bf16.mxu0 0
        %521 = vmatpush1.bf16.msra.mxu0 0
        %522 = vmatprep.subr.bf16.mxu0 0
        %523 = vmatpush1.bf16.msra.mxu0 0
        %524 = vmatprep.subr.bf16.mxu0 0
        %525 = vmatpush1.bf16.msra.mxu0 0
        %526 = vmatprep.subr.bf16.mxu0 0
        %527 = vmatpush1.bf16.msra.mxu0 0
        %528 = vmatprep.subr.bf16.mxu0 0
        %529 = vmatpush1.bf16.msra.mxu0 0
        %530 = vmatprep.subr.bf16.mxu0 0
        %531 = vmatpush1.bf16.msra.mxu0 0
        %532 = vmatprep.mubr.bf16.mxu0 0
        %533 = vmatmul.mubr.bf16.gmra.mrb[0].mxu0 %v495
        %v534 = vpop.f32.mrb[0].mxu0
        %v535 = vadd.f32 0.0, %v534
        %v536 = vpop.f32.mrb[0].mxu0
        %v537 = vpop.f32.mrb[0].mxu0
        %v538 = vadd.f32 0.0, %v537
        %v539 = vpop.f32.mrb[0].mxu0
        %540 = vdwg.mxu0
        %v541 = vpack.c.bf16 %v538, %v535
        %v543 = vunpack.c.l.b16 %v541
        %v544 = vunpack.c.h.b16 %v541
        %v545 = vpack.c.b16 %v543, %v543
        %v546 = vpack.c.b16 %v544, %v544
        %s549 = scalar_lea.vmem %s206, 16 [#allocation5]
        %550 = vst [vmem:[%s549] sm:$0xf] %v545
        %551 = vst [vmem:[%s549 + $0x4] sm:$0xf] %v546
        %v552 = vld [vmem:[%s1] sm:$0xf]
        %v553 = vld [vmem:[%s1 + $0x4] sm:$0xf]
        %v556 = vunpack.c.l.b16 %v552
        %v557 = vunpack.c.l.b16 %v553
        %v558 = vpack.c.b16 %v557, %v556
        %v560 = vsel %vm363, %v558, 0
        %v563 = vsel %vm367, %v351, 0
        %565 = vmatprep.subr.bf16.mxu0 0
        %566 = vmatpush1.bf16.msra.mxu0 %v563
        %567 = vmatprep.subr.bf16.mxu0 0
        %568 = vmatpush1.bf16.msra.mxu0 0
        %569 = vmatprep.subr.bf16.mxu0 0
        %570 = vmatpush1.bf16.msra.mxu0 0
        %571 = vmatprep.subr.bf16.mxu0 0
        %572 = vmatpush1.bf16.msra.mxu0 0
        %573 = vmatprep.subr.bf16.mxu0 0
        %574 = vmatpush1.bf16.msra.mxu0 0
        %575 = vmatprep.subr.bf16.mxu0 0
        %576 = vmatpush1.bf16.msra.mxu0 0
        %577 = vmatprep.subr.bf16.mxu0 0
        %578 = vmatpush1.bf16.msra.mxu0 0
        %579 = vmatprep.subr.bf16.mxu0 0
        %580 = vmatpush1.bf16.msra.mxu0 0
        %581 = vmatprep.subr.bf16.mxu0 0
        %582 = vmatpush1.bf16.msra.mxu0 0
        %583 = vmatprep.subr.bf16.mxu0 0
        %584 = vmatpush1.bf16.msra.mxu0 0
        %585 = vmatprep.subr.bf16.mxu0 0
        %586 = vmatpush1.bf16.msra.mxu0 0
        %587 = vmatprep.subr.bf16.mxu0 0
        %588 = vmatpush1.bf16.msra.mxu0 0
        %589 = vmatprep.subr.bf16.mxu0 0
        %590 = vmatpush1.bf16.msra.mxu0 0
        %591 = vmatprep.subr.bf16.mxu0 0
        %592 = vmatpush1.bf16.msra.mxu0 0
        %593 = vmatprep.subr.bf16.mxu0 0
        %594 = vmatpush1.bf16.msra.mxu0 0
        %595 = vmatprep.subr.bf16.mxu0 0
        %596 = vmatpush1.bf16.msra.mxu0 0
        %597 = vmatprep.mubr.bf16.mxu0 0
        %598 = vmatmul.mubr.bf16.gmra.mrb[0].mxu0 %v560
        %v599 = vpop.f32.mrb[0].mxu0
        %v600 = vadd.f32 0.0, %v599
        %v601 = vpop.f32.mrb[0].mxu0
        %v602 = vpop.f32.mrb[0].mxu0
        %v603 = vadd.f32 0.0, %v602
        %v604 = vpop.f32.mrb[0].mxu0
        %605 = vdwg.mxu0
        %v606 = vpack.c.bf16 %v603, %v600
        %v608 = vunpack.c.l.b16 %v606
        %v609 = vunpack.c.h.b16 %v606
        %v610 = vpack.c.b16 %v608, %v608
        %v611 = vpack.c.b16 %v609, %v609
        %s614 = scalar_lea.vmem %s206, 24 [#allocation5]
        %615 = vst [vmem:[%s614] sm:$0xf] %v610
        %616 = vst [vmem:[%s614 + $0x4] sm:$0xf] %v611
        %v617 = vld [vmem:[%s1] sm:$0xf]
        %v618 = vld [vmem:[%s1 + $0x4] sm:$0xf]
        %v621 = vunpack.c.l.b16 %v617
        %v622 = vunpack.c.l.b16 %v618
        %v623 = vpack.c.b16 %v622, %v621
        %v625 = vsel %vm363, %v623, 0
        %v628 = vsel %vm367, %v352, 0
        %630 = vmatprep.subr.bf16.mxu0 0
        %631 = vmatpush1.bf16.msra.mxu0 %v628
        %632 = vmatprep.subr.bf16.mxu0 0
        %633 = vmatpush1.bf16.msra.mxu0 0
        %634 = vmatprep.subr.bf16.mxu0 0
        %635 = vmatpush1.bf16.msra.mxu0 0
        %636 = vmatprep.subr.bf16.mxu0 0
        %637 = vmatpush1.bf16.msra.mxu0 0
        %638 = vmatprep.subr.bf16.mxu0 0
        %639 = vmatpush1.bf16.msra.mxu0 0
        %640 = vmatprep.subr.bf16.mxu0 0
        %641 = vmatpush1.bf16.msra.mxu0 0
        %642 = vmatprep.subr.bf16.mxu0 0
        %643 = vmatpush1.bf16.msra.mxu0 0
        %644 = vmatprep.subr.bf16.mxu0 0
        %645 = vmatpush1.bf16.msra.mxu0 0
        %646 = vmatprep.subr.bf16.mxu0 0
        %647 = vmatpush1.bf16.msra.mxu0 0
        %648 = vmatprep.subr.bf16.mxu0 0
        %649 = vmatpush1.bf16.msra.mxu0 0
        %650 = vmatprep.subr.bf16.mxu0 0
        %651 = vmatpush1.bf16.msra.mxu0 0
        %652 = vmatprep.subr.bf16.mxu0 0
        %653 = vmatpush1.bf16.msra.mxu0 0
        %654 = vmatprep.subr.bf16.mxu0 0
        %655 = vmatpush1.bf16.msra.mxu0 0
        %656 = vmatprep.subr.bf16.mxu0 0
        %657 = vmatpush1.bf16.msra.mxu0 0
        %658 = vmatprep.subr.bf16.mxu0 0
        %659 = vmatpush1.bf16.msra.mxu0 0
        %660 = vmatprep.subr.bf16.mxu0 0
        %661 = vmatpush1.bf16.msra.mxu0 0
        %662 = vmatprep.mubr.bf16.mxu0 0
        %663 = vmatmul.mubr.bf16.gmra.mrb[0].mxu0 %v625
        %v664 = vpop.f32.mrb[0].mxu0
        %v665 = vadd.f32 0.0, %v664
        %v666 = vpop.f32.mrb[0].mxu0
        %v667 = vpop.f32.mrb[0].mxu0
        %v668 = vadd.f32 0.0, %v667
        %v669 = vpop.f32.mrb[0].mxu0
        %670 = vdwg.mxu0
        %v671 = vpack.c.bf16 %v668, %v665
        %v673 = vunpack.c.l.b16 %v671
        %v674 = vunpack.c.h.b16 %v671
        %v675 = vpack.c.b16 %v673, %v673
        %v676 = vpack.c.b16 %v674, %v674
        %s679 = scalar_lea.vmem %s206, 32 [#allocation5]
        %680 = vst [vmem:[%s679] sm:$0xf] %v675
        %681 = vst [vmem:[%s679 + $0x4] sm:$0xf] %v676
        %v682 = vld [vmem:[%s1] sm:$0xf]
        %v683 = vld [vmem:[%s1 + $0x4] sm:$0xf]
        %v686 = vunpack.c.l.b16 %v682
        %v687 = vunpack.c.l.b16 %v683
        %v688 = vpack.c.b16 %v687, %v686
        %v690 = vsel %vm363, %v688, 0
        %v693 = vsel %vm367, %v353, 0
        %695 = vmatprep.subr.bf16.mxu0 0
        %696 = vmatpush1.bf16.msra.mxu0 %v693
        %697 = vmatprep.subr.bf16.mxu0 0
        %698 = vmatpush1.bf16.msra.mxu0 0
        %699 = vmatprep.subr.bf16.mxu0 0
        %700 = vmatpush1.bf16.msra.mxu0 0
        %701 = vmatprep.subr.bf16.mxu0 0
        %702 = vmatpush1.bf16.msra.mxu0 0
        %703 = vmatprep.subr.bf16.mxu0 0
        %704 = vmatpush1.bf16.msra.mxu0 0
        %705 = vmatprep.subr.bf16.mxu0 0
        %706 = vmatpush1.bf16.msra.mxu0 0
        %707 = vmatprep.subr.bf16.mxu0 0
        %708 = vmatpush1.bf16.msra.mxu0 0
        %709 = vmatprep.subr.bf16.mxu0 0
        %710 = vmatpush1.bf16.msra.mxu0 0
        %711 = vmatprep.subr.bf16.mxu0 0
        %712 = vmatpush1.bf16.msra.mxu0 0
        %713 = vmatprep.subr.bf16.mxu0 0
        %714 = vmatpush1.bf16.msra.mxu0 0
        %715 = vmatprep.subr.bf16.mxu0 0
        %716 = vmatpush1.bf16.msra.mxu0 0
        %717 = vmatprep.subr.bf16.mxu0 0
        %718 = vmatpush1.bf16.msra.mxu0 0
        %719 = vmatprep.subr.bf16.mxu0 0
        %720 = vmatpush1.bf16.msra.mxu0 0
        %721 = vmatprep.subr.bf16.mxu0 0
        %722 = vmatpush1.bf16.msra.mxu0 0
        %723 = vmatprep.subr.bf16.mxu0 0
        %724 = vmatpush1.bf16.msra.mxu0 0
        %725 = vmatprep.subr.bf16.mxu0 0
        %726 = vmatpush1.bf16.msra.mxu0 0
        %727 = vmatprep.mubr.bf16.mxu0 0
        %728 = vmatmul.mubr.bf16.gmra.mrb[0].mxu0 %v690
        %v729 = vpop.f32.mrb[0].mxu0
        %v730 = vadd.f32 0.0, %v729
        %v731 = vpop.f32.mrb[0].mxu0
        %v732 = vpop.f32.mrb[0].mxu0
        %v733 = vadd.f32 0.0, %v732
        %v734 = vpop.f32.mrb[0].mxu0
        %735 = vdwg.mxu0
        %v736 = vpack.c.bf16 %v733, %v730
        %v738 = vunpack.c.l.b16 %v736
        %v739 = vunpack.c.h.b16 %v736
        %v740 = vpack.c.b16 %v738, %v738
        %v741 = vpack.c.b16 %v739, %v739
        %s744 = scalar_lea.vmem %s206, 40 [#allocation5]
        %745 = vst [vmem:[%s744] sm:$0xf] %v740
        %746 = vst [vmem:[%s744 + $0x4] sm:$0xf] %v741
        %v747 = vld [vmem:[%s1] sm:$0xf]
        %v748 = vld [vmem:[%s1 + $0x4] sm:$0xf]
        %v751 = vunpack.c.l.b16 %v747
        %v752 = vunpack.c.l.b16 %v748
        %v753 = vpack.c.b16 %v752, %v751
        %v755 = vsel %vm363, %v753, 0
        %v758 = vsel %vm367, %v354, 0
        %760 = vmatprep.subr.bf16.mxu0 0
        %761 = vmatpush1.bf16.msra.mxu0 %v758
        %762 = vmatprep.subr.bf16.mxu0 0
        %763 = vmatpush1.bf16.msra.mxu0 0
        %764 = vmatprep.subr.bf16.mxu0 0
        %765 = vmatpush1.bf16.msra.mxu0 0
        %766 = vmatprep.subr.bf16.mxu0 0
        %767 = vmatpush1.bf16.msra.mxu0 0
        %768 = vmatprep.subr.bf16.mxu0 0
        %769 = vmatpush1.bf16.msra.mxu0 0
        %770 = vmatprep.subr.bf16.mxu0 0
        %771 = vmatpush1.bf16.msra.mxu0 0
        %772 = vmatprep.subr.bf16.mxu0 0
        %773 = vmatpush1.bf16.msra.mxu0 0
        %774 = vmatprep.subr.bf16.mxu0 0
        %775 = vmatpush1.bf16.msra.mxu0 0
        %776 = vmatprep.subr.bf16.mxu0 0
        %777 = vmatpush1.bf16.msra.mxu0 0
        %778 = vmatprep.subr.bf16.mxu0 0
        %779 = vmatpush1.bf16.msra.mxu0 0
        %780 = vmatprep.subr.bf16.mxu0 0
        %781 = vmatpush1.bf16.msra.mxu0 0
        %782 = vmatprep.subr.bf16.mxu0 0
        %783 = vmatpush1.bf16.msra.mxu0 0
        %784 = vmatprep.subr.bf16.mxu0 0
        %785 = vmatpush1.bf16.msra.mxu0 0
        %786 = vmatprep.subr.bf16.mxu0 0
        %787 = vmatpush1.bf16.msra.mxu0 0
        %788 = vmatprep.subr.bf16.mxu0 0
        %789 = vmatpush1.bf16.msra.mxu0 0
        %790 = vmatprep.subr.bf16.mxu0 0
        %791 = vmatpush1.bf16.msra.mxu0 0
        %792 = vmatprep.mubr.bf16.mxu0 0
        %793 = vmatmul.mubr.bf16.gmra.mrb[0].mxu0 %v755
        %v794 = vpop.f32.mrb[0].mxu0
        %v795 = vadd.f32 0.0, %v794
        %v796 = vpop.f32.mrb[0].mxu0
        %v797 = vpop.f32.mrb[0].mxu0
        %v798 = vadd.f32 0.0, %v797
        %v799 = vpop.f32.mrb[0].mxu0
        %800 = vdwg.mxu0
        %v801 = vpack.c.bf16 %v798, %v795
        %v803 = vunpack.c.l.b16 %v801
        %v804 = vunpack.c.h.b16 %v801
        %v805 = vpack.c.b16 %v803, %v803
        %v806 = vpack.c.b16 %v804, %v804
        %s809 = scalar_lea.vmem %s206, 48 [#allocation5]
        %810 = vst [vmem:[%s809] sm:$0xf] %v805
        %811 = vst [vmem:[%s809 + $0x4] sm:$0xf] %v806
        %v812 = vld [vmem:[%s1] sm:$0xf]
        %v813 = vld [vmem:[%s1 + $0x4] sm:$0xf]
        %v816 = vunpack.c.l.b16 %v812
        %v817 = vunpack.c.l.b16 %v813
        %v818 = vpack.c.b16 %v817, %v816
        %v820 = vsel %vm363, %v818, 0
        %v823 = vsel %vm367, %v355, 0
        %825 = vmatprep.subr.bf16.mxu0 0
        %826 = vmatpush1.bf16.msra.mxu0 %v823
        %827 = vmatprep.subr.bf16.mxu0 0
        %828 = vmatpush1.bf16.msra.mxu0 0
        %829 = vmatprep.subr.bf16.mxu0 0
        %830 = vmatpush1.bf16.msra.mxu0 0
        %831 = vmatprep.subr.bf16.mxu0 0
        %832 = vmatpush1.bf16.msra.mxu0 0
        %833 = vmatprep.subr.bf16.mxu0 0
        %834 = vmatpush1.bf16.msra.mxu0 0
        %835 = vmatprep.subr.bf16.mxu0 0
        %836 = vmatpush1.bf16.msra.mxu0 0
        %837 = vmatprep.subr.bf16.mxu0 0
        %838 = vmatpush1.bf16.msra.mxu0 0
        %839 = vmatprep.subr.bf16.mxu0 0
        %840 = vmatpush1.bf16.msra.mxu0 0
        %841 = vmatprep.subr.bf16.mxu0 0
        %842 = vmatpush1.bf16.msra.mxu0 0
        %843 = vmatprep.subr.bf16.mxu0 0
        %844 = vmatpush1.bf16.msra.mxu0 0
        %845 = vmatprep.subr.bf16.mxu0 0
        %846 = vmatpush1.bf16.msra.mxu0 0
        %847 = vmatprep.subr.bf16.mxu0 0
        %848 = vmatpush1.bf16.msra.mxu0 0
        %849 = vmatprep.subr.bf16.mxu0 0
        %850 = vmatpush1.bf16.msra.mxu0 0
        %851 = vmatprep.subr.bf16.mxu0 0
        %852 = vmatpush1.bf16.msra.mxu0 0
        %853 = vmatprep.subr.bf16.mxu0 0
        %854 = vmatpush1.bf16.msra.mxu0 0
        %855 = vmatprep.subr.bf16.mxu0 0
        %856 = vmatpush1.bf16.msra.mxu0 0
        %857 = vmatprep.mubr.bf16.mxu0 0
        %858 = vmatmul.mubr.bf16.gmra.mrb[0].mxu0 %v820
        %v859 = vpop.f32.mrb[0].mxu0
        %v860 = vadd.f32 0.0, %v859
        %v861 = vpop.f32.mrb[0].mxu0
        %v862 = vpop.f32.mrb[0].mxu0
        %v863 = vadd.f32 0.0, %v862
        %v864 = vpop.f32.mrb[0].mxu0
        %865 = vdwg.mxu0
        %v866 = vpack.c.bf16 %v863, %v860
        %v868 = vunpack.c.l.b16 %v866
        %v869 = vunpack.c.h.b16 %v866
        %v870 = vpack.c.b16 %v868, %v868
        %v871 = vpack.c.b16 %v869, %v869
        %s874 = scalar_lea.vmem %s206, 56 [#allocation5]
        %875 = vst [vmem:[%s874] sm:$0xf] %v870
        %876 = vst [vmem:[%s874 + $0x4] sm:$0xf] %v871
        %s877 = sand.u32 %s112, 1
        %s878 = scalar_lea.sflag [#allocation4], %s877
        %s879 = sand.u32 %s112, 1
        %s880 = smul.addr %s879, 64
        %s881 = scalar_lea.vmem [#allocation5], %s880
        // Predicated region
        $region37: #{tpu_custom_call.1} parent=31 // pred_check
          %p882 = pneg %p122
        $region38: #{tpu_custom_call.1} parent=31 // pred_check_branch
          %884 = sbr.rel (%p882) target = $region40
        $region39: #{tpu_custom_call.1} parent=31 // pred_region
          %s885 = smul.u32 8, %s25
          %s887 = ssub.s32 1024, 1024
          %888 = vsyncadd %s878, %s887
          %s889 = smul.addr %s885, 2
          %s890 = smul.addr %s24, 16
          %s891 = sadd.s32 %s889, %s890
          %s892 = smul.addr %s891, 64
          %s893 = scalar_lea.hbm %s3, %s892
          %s894 = sshll.u32 %s881, 4
          %s895 = int_to_ptr.vmem [resolvable:$true] %s894
          %900 = dma.vmem_to_hbm [thread:$0]  %s895, 1024, %s893, %s878, 64, 64, 4
        $region40: #{tpu_custom_call.1} parent=31 // pred_fallthru
          _
      $region32: #{tpu_custom_call.1} parent=5 // pred_fallthru
        _
      %p901 = scmp.le.s32.totalorder 2, %s15
      // Predicated region
      $region41: #{tpu_custom_call.1} parent=5 // pred_check
        %p902 = pneg %p901
      $region42: #{tpu_custom_call.1} parent=5 // pred_check_branch
        %904 = sbr.rel (%p902) target = $region44
      $region43: #{tpu_custom_call.1} parent=5 // pred_region
        %s905 = ssub.s32 %s15, 2
        // Predicated region
        $region45: #{tpu_custom_call.1} parent=43 // pred_check
          %p906 = pneg %p128
        $region46: #{tpu_custom_call.1} parent=43 // pred_check_branch
          %908 = sbr.rel (%p906) target = $region48
        $region47: #{tpu_custom_call.1} parent=43 // pred_region
          %s909 = sand.u32 %s113, 1
          %s910 = scalar_lea.sflag [#allocation4], %s909
          %s911 = sand.u32 %s113, 1
          %s912 = smul.addr %s911, 64
          %s913 = scalar_lea.vmem [#allocation5], %s912
          %914 = dma.done %s910, 1024
        $region48: #{tpu_custom_call.1} parent=43 // pred_fallthru
          _
      $region44: #{tpu_custom_call.1} parent=5 // pred_fallthru
        _
    $region6: #{tpu_custom_call.1} parent=1 // loop_footer
      %s19 = sadd.s32 1, %s15
    $region7: #{tpu_custom_call.1} parent=1 // loop_footer_branch
      %14 = sbr.rel target = $region3
    $region8: #{tpu_custom_call.1} parent=1 // loop_exit
      _
    %915 = vsyncpa [#allocation3], 1
    %s916 = scalar_lea.sflag [#allocation3], 1
    %917 = vsyncpa %s916, 1
    %918 = vsyncpa [#allocation4], 1
    %s919 = scalar_lea.sflag [#allocation4], 1
    %920 = vsyncpa %s919, 1

</llo_original>
